<compile_context>
chip_gen: v7x
topology: tpu7x:2x2x1
jax: 0.10.0
libtpu: 0.0.40
codegen_flags: <defaults>
</compile_context>

<pallas_src>
import jax
import jax.numpy as jnp
from jax.experimental import pallas as pl
from jax.experimental.pallas import tpu as pltpu


_IGNORE_INDEX = -100  # PyTorch nn.CrossEntropyLoss default ignore_index


def _ce_kernel(logits_ref, labels_ref, out_ref, sum_acc, cnt_acc):
    """Process one batch tile; accumulate per-row CE and valid-row count."""
    i = pl.program_id(0)

    @pl.when(i == 0)
    def _init():
        sum_acc[...] = jnp.zeros_like(sum_acc)
        cnt_acc[...] = jnp.zeros_like(cnt_acc)

    # Load in native dtype; upcast inside the kernel (bf16 inputs only pay bf16
    # HBM bandwidth).  All reductions / exp run in f32 (required on v5e).
    logits = logits_ref[...].astype(jnp.float32)            # (TB, C)
    labels = labels_ref[...]                                 # (TB, 1) int32

    # Numerically stable log-sum-exp on the shifted logits.  The row_max terms
    # of lse and of the target logit cancel, so row_max is never added back.
    row_max = jnp.max(logits, axis=-1, keepdims=True)        # (TB, 1)
    shifted = logits - row_max                               # (TB, C)
    lse = jnp.log(jnp.sum(jnp.exp(shifted), axis=-1, keepdims=True))  # (TB, 1)

    # Gather the target-class (shifted) logit via a lane-wise one-hot select.
    class_ids = jax.lax.broadcasted_iota(jnp.int32, shifted.shape, 1)  # (TB, C)
    onehot = (class_ids == labels).astype(jnp.float32)
    target_shifted = jnp.sum(onehot * shifted, axis=-1, keepdims=True)  # (TB, 1)

    # Mask ignore_index / padding rows (label < 0) out of both sum and count.
    valid = (labels >= 0).astype(jnp.float32)                 # (TB, 1)
    sum_acc[...] += (lse - target_shifted) * valid
    cnt_acc[...] += valid

    @pl.when(i == pl.num_programs(0) - 1)
    def _finalize():
        # Single cross-lane reduce + one scalar divide at the very end; result
        # lands in the SMEM scalar output (mean over non-ignored rows).
        out_ref[0, 0] = jnp.sum(sum_acc[...]) / jnp.sum(cnt_acc[...])


def _round_up(x, m):
    return ((x + m - 1) // m) * m


def cross_entropy_loss(features, labels):
    """features: (B, C) float logits; labels: (B,) int class ids. Returns scalar f32 mean CE."""
    b, c = features.shape
    itemsize = jnp.dtype(features.dtype).itemsize

    # Batch tile: multiple of 16 (bf16 sublane packing), sized so the
    # double-buffered logits tile stays within ~8 MiB of VMEM.  This fits
    # v7x (64 MiB VMEM) with headroom and trivially fits v5e/v6e (128 MiB).
    tb = (8 * 1024 * 1024) // (2 * max(c, 1) * itemsize)
    tb = max(16, min(1024, (tb // 16) * 16))
    tb = min(tb, _round_up(b, 16))          # don't tile wider than the (padded) batch

    bp = _round_up(b, tb)
    num_tiles = bp // tb

    labels2d = labels.astype(jnp.int32).reshape(b, 1)
    if bp != b:
        pad = bp - b
        features = jnp.pad(features, ((0, pad), (0, 0)))
        labels2d = jnp.pad(labels2d, ((0, pad), (0, 0)),
                           constant_values=_IGNORE_INDEX)  # padded rows are ignored

    # Explicit VMEM budget: double-buffered logits + labels tiles plus headroom,
    # never above 48 MiB so it is safe on v7x's 64 MiB VMEM.
    needed = 2 * tb * (c * itemsize + 4)
    vmem_limit = int(min(48 * 2**20, max(4 * needed, 16 * 2**20)))

    out = pl.pallas_call(
        _ce_kernel,
        out_shape=jax.ShapeDtypeStruct((1, 1), jnp.float32),
        grid_spec=pltpu.PrefetchScalarGridSpec(
            num_scalar_prefetch=0,
            grid=(num_tiles,),
            in_specs=[
                pl.BlockSpec((tb, c), lambda i: (i, 0)),
                pl.BlockSpec((tb, 1), lambda i: (i, 0)),
            ],
            # Scalar result lives in SMEM: no lane-sparse masked VMEM store.
            out_specs=pl.BlockSpec(memory_space=pltpu.MemorySpace.SMEM),
            scratch_shapes=[
                pltpu.VMEM((tb, 1), jnp.float32),   # running sum of per-row CE
                pltpu.VMEM((tb, 1), jnp.float32),   # running count of valid rows
            ],
        ),
        compiler_params=pltpu.CompilerParams(
            # Accumulator/output revisited every grid step -> reduction axis.
            dimension_semantics=("arbitrary",),
            vmem_limit_bytes=vmem_limit,
        ),
    )(features, labels2d)
    return out[0, 0]


class Loss:
    """JAX/Pallas port of the PyTorch Loss module (CrossEntropyLoss, mean reduction)."""

    def __call__(self, features, label):
        return cross_entropy_loss(features, label["labels"])


if __name__ == "__main__":
    key = jax.random.PRNGKey(0)
    k_feat, k_lab = jax.random.split(key)

    B, C = 8, 10  # CIFAR-10-style: small batch, 10 classes
    features = jax.random.normal(k_feat, (B, C), dtype=jnp.float32)
    labels = jax.random.randint(k_lab, (B,), 0, C, dtype=jnp.int32)

    loss = Loss()(features, {"labels": labels})
    loss = jax.block_until_ready(loss)

    # reference check against plain-JAX cross entropy
    logp = jax.nn.log_softmax(features, axis=-1)
    ref = -jnp.mean(logp[jnp.arange(B), labels])
    assert jnp.allclose(loss, ref, atol=1e-5, rtol=1e-5), (loss, ref)

    print("KERNEL_OK")
</pallas_src>

<mosaic_0001>
module attributes {stable_mosaic.version = 11 : i64} {
  func.func @_ce_kernel(%arg0: i32, %arg1: memref<16x10xf32, #tpu.memory_space<vmem>>, %arg2: memref<16x1xi32, #tpu.memory_space<vmem>>, %arg3: memref<1x1xf32, #tpu.memory_space<smem>>, %arg4: memref<16x1xf32, #tpu.memory_space<vmem>>, %arg5: memref<16x1xf32, #tpu.memory_space<vmem>>) attributes {dimension_semantics = [#tpu.dimension_semantics<arbitrary>], iteration_bounds = array<i64: 1>, scalar_prefetch = 0 : i64, scratch_operands = 2 : i64, tpu.core_type = #tpu.core_type<tc>, window_params = [{transform_indices = @transform_0, window_bounds = array<i64: 16, 10>}, {transform_indices = @transform_1, window_bounds = array<i64: 16, 1>}, {transform_indices = @transform_2, window_bounds = array<i64: 1, 1>}]} {
    %c0_i32 = arith.constant 0 : i32
    %0 = arith.cmpi eq, %arg0, %c0_i32 : i32
    %1 = arith.extui %0 : i1 to i32
    %c0_i32_0 = arith.constant 0 : i32
    %2 = arith.cmpi ne, %1, %c0_i32_0 : i32
    scf.if %2 {
      %cst_17 = arith.constant 0.000000e+00 : f32
      %36 = vector.broadcast %cst_17 : f32 to vector<16x1xf32>
      %c0_18 = arith.constant 0 : index
      %c0_19 = arith.constant 0 : index
      %37 = vector.load %arg4[%c0_18, %c0_19] : memref<16x1xf32, #tpu.memory_space<vmem>>, vector<16x1xf32>
      tpu.vector_store %arg4[%c0_18, %c0_19], %36 {strides = array<i32>} : memref<16x1xf32, #tpu.memory_space<vmem>>, vector<16x1xf32>,
      %cst_20 = arith.constant 0.000000e+00 : f32
      %38 = vector.broadcast %cst_20 : f32 to vector<16x1xf32>
      %c0_21 = arith.constant 0 : index
      %c0_22 = arith.constant 0 : index
      %39 = vector.load %arg5[%c0_21, %c0_22] : memref<16x1xf32, #tpu.memory_space<vmem>>, vector<16x1xf32>
      tpu.vector_store %arg5[%c0_21, %c0_22], %38 {strides = array<i32>} : memref<16x1xf32, #tpu.memory_space<vmem>>, vector<16x1xf32>,
    } else {
    }
    %c0 = arith.constant 0 : index
    %c0_1 = arith.constant 0 : index
    %3 = vector.load %arg1[%c0, %c0_1] : memref<16x10xf32, #tpu.memory_space<vmem>>, vector<16x10xf32>
    %c0_2 = arith.constant 0 : index
    %c0_3 = arith.constant 0 : index
    %4 = vector.load %arg2[%c0_2, %c0_3] : memref<16x1xi32, #tpu.memory_space<vmem>>, vector<16x1xi32>
    %cst = arith.constant dense<0xFF800000> : vector<16xf32>
    %5 = vector.multi_reduction <maximumf>, %3, %cst [1] : vector<16x10xf32> to vector<16xf32>
    %6 = vector.shape_cast %5 : vector<16xf32> to vector<16x1xf32>
    %7 = vector.broadcast %6 : vector<16x1xf32> to vector<16x10xf32>
    %8 = arith.subf %3, %7 : vector<16x10xf32>
    %9 = math.exp %8 : vector<16x10xf32>
    %cst_4 = arith.constant dense<0.000000e+00> : vector<16xf32>
    %10 = vector.multi_reduction <add>, %9, %cst_4 [1] : vector<16x10xf32> to vector<16xf32>
    %11 = vector.shape_cast %10 : vector<16xf32> to vector<16x1xf32>
    %12 = math.log %11 : vector<16x1xf32>
    %13 = tpu.iota {dimensions = array<i32: 1>} : vector<16x10xi32>
    %14 = vector.broadcast %4 : vector<16x1xi32> to vector<16x10xi32>
    %15 = arith.cmpi eq, %13, %14 : vector<16x10xi32>
    %16 = arith.extui %15 : vector<16x10xi1> to vector<16x10xi32>
    %17 = arith.sitofp %16 : vector<16x10xi32> to vector<16x10xf32>
    %18 = arith.mulf %17, %8 : vector<16x10xf32>
    %cst_5 = arith.constant dense<0.000000e+00> : vector<16xf32>
    %19 = vector.multi_reduction <add>, %18, %cst_5 [1] : vector<16x10xf32> to vector<16xf32>
    %20 = vector.shape_cast %19 : vector<16xf32> to vector<16x1xf32>
    %c0_i32_6 = arith.constant 0 : i32
    %21 = vector.broadcast %c0_i32_6 : i32 to vector<16x1xi32>
    %22 = arith.cmpi sge, %4, %21 : vector<16x1xi32>
    %23 = arith.extui %22 : vector<16x1xi1> to vector<16x1xi32>
    %24 = arith.sitofp %23 : vector<16x1xi32> to vector<16x1xf32>
    %c0_7 = arith.constant 0 : index
    %c0_8 = arith.constant 0 : index
    %25 = vector.load %arg4[%c0_7, %c0_8] : memref<16x1xf32, #tpu.memory_space<vmem>>, vector<16x1xf32>
    %26 = arith.subf %12, %20 : vector<16x1xf32>
    %27 = arith.mulf %26, %24 : vector<16x1xf32>
    %28 = arith.addf %25, %27 : vector<16x1xf32>
    %c0_9 = arith.constant 0 : index
    %c0_10 = arith.constant 0 : index
    %29 = vector.load %arg4[%c0_9, %c0_10] : memref<16x1xf32, #tpu.memory_space<vmem>>, vector<16x1xf32>
    tpu.vector_store %arg4[%c0_9, %c0_10], %28 {strides = array<i32>} : memref<16x1xf32, #tpu.memory_space<vmem>>, vector<16x1xf32>,
    %c0_11 = arith.constant 0 : index
    %c0_12 = arith.constant 0 : index
    %30 = vector.load %arg5[%c0_11, %c0_12] : memref<16x1xf32, #tpu.memory_space<vmem>>, vector<16x1xf32>
    %31 = arith.addf %30, %24 : vector<16x1xf32>
    %c0_13 = arith.constant 0 : index
    %c0_14 = arith.constant 0 : index
    %32 = vector.load %arg5[%c0_13, %c0_14] : memref<16x1xf32, #tpu.memory_space<vmem>>, vector<16x1xf32>
    tpu.vector_store %arg5[%c0_13, %c0_14], %31 {strides = array<i32>} : memref<16x1xf32, #tpu.memory_space<vmem>>, vector<16x1xf32>,
    %c0_i32_15 = arith.constant 0 : i32
    %33 = arith.cmpi eq, %arg0, %c0_i32_15 : i32
    %34 = arith.extui %33 : i1 to i32
    %c0_i32_16 = arith.constant 0 : i32
    %35 = arith.cmpi ne, %34, %c0_i32_16 : i32
    scf.if %35 {
      %c0_17 = arith.constant 0 : index
      %c0_18 = arith.constant 0 : index
      %36 = vector.load %arg4[%c0_17, %c0_18] : memref<16x1xf32, #tpu.memory_space<vmem>>, vector<16x1xf32>
      %37 = vector.shape_cast %36 : vector<16x1xf32> to vector<1x16x1xf32>
      %cst_19 = arith.constant dense<0.000000e+00> : vector<1xf32>
      %38 = vector.multi_reduction <add>, %37, %cst_19 [1, 2] : vector<1x16x1xf32> to vector<1xf32>
      %39 = vector.shape_cast %38 : vector<1xf32> to vector<1x1x1xf32>
      %40 = vector.extract %39[0, 0, 0] : f32 from vector<1x1x1xf32>
      %c0_20 = arith.constant 0 : index
      %c0_21 = arith.constant 0 : index
      %41 = vector.load %arg5[%c0_20, %c0_21] : memref<16x1xf32, #tpu.memory_space<vmem>>, vector<16x1xf32>
      %42 = vector.shape_cast %41 : vector<16x1xf32> to vector<1x16x1xf32>
      %cst_22 = arith.constant dense<0.000000e+00> : vector<1xf32>
      %43 = vector.multi_reduction <add>, %42, %cst_22 [1, 2] : vector<1x16x1xf32> to vector<1xf32>
      %44 = vector.shape_cast %43 : vector<1xf32> to vector<1x1x1xf32>
      %45 = vector.extract %44[0, 0, 0] : f32 from vector<1x1x1xf32>
      %46 = arith.divf %40, %45 : f32
      %c0_23 = arith.constant 0 : index
      %c0_24 = arith.constant 0 : index
      %47 = memref.load %arg3[%c0_23, %c0_24] : memref<1x1xf32, #tpu.memory_space<smem>>
      memref.store %46, %arg3[%c0_23, %c0_24] : memref<1x1xf32, #tpu.memory_space<smem>>
    } else {
    }
    return
  }
  func.func @transform_0(%arg0: i32) -> (i32, i32) {
    %c0_i32 = arith.constant 0 : i32
    %c0_i32_0 = arith.constant 0 : i32
    return %arg0, %c0_i32 : i32, i32
  }
  func.func @transform_1(%arg0: i32) -> (i32, i32) {
    %c0_i32 = arith.constant 0 : i32
    %c0_i32_0 = arith.constant 0 : i32
    return %arg0, %c0_i32 : i32, i32
  }
  func.func @transform_2(%arg0: i32) -> (i32, i32) {
    %c0_i32 = arith.constant 0 : i32
    %c0_i32_0 = arith.constant 0 : i32
    %c0_i32_1 = arith.constant 0 : i32
    return %c0_i32, %c0_i32_0 : i32, i32
  }
}

</mosaic_0001>

<llo_original>
// kernel: tpu_custom_call.1
$region0: #{tpu_custom_call.1}
  #allocation0 [shape = 'u32[]', space=smem, size = 0x4, offset = 0x4, fixed_abs, tag = 'smem constant byte address 0x4 - core index']
  #allocation1 [shape = 'u32[144,128]{1,0:T(1,128)}', space=vmem, size = 0x12000, scoped, tag = 'internal scratch']
  #allocation2 [shape = 'f32[16,1]{1,0:T(8,128)}', space=vmem, size = 0x2000, scoped, tag = 'scratch operand']
  #allocation3 [shape = 'f32[16,1]{1,0:T(8,128)}', space=vmem, size = 0x2000, scoped, tag = 'scratch operand']
  %s0 = inlined_call_operand.vmem [shape: f32[16,10], index: 0, kind: input, shape index: {}]
  %s1 = inlined_call_operand.vmem [shape: s32[16,1], index: 1, kind: input, shape index: {}]
  %s2 = inlined_call_operand.hbm [shape: f32[1,1], index: 2, kind: output, shape index: {}]
  %s3 = sld [smem:[#allocation0]]
  $region26: #{tpu_custom_call.1} parent=0
    _
  %s5 = ssub.s32 1, %s3
  %s6 = scalar_select 0, %s5, %s3
  $region1: #{tpu_custom_call.1} parent=0
    #allocation4 [shape = 'u8[512]{0}', space=smem, size = 0x200, scoped, tag = 'output window, operand 0, single buffered']
    #allocation5 [shape = 's32[1]{0}', space=sflag, size = 0x4, scoped, tag = 'scoped memory for tpu_custom_call.1']
    %7 = vsyncpa [#allocation5], 0
    // Predicated region
    $region2: #{tpu_custom_call.1} parent=1 // pred_check
      _
    $region3: #{tpu_custom_call.1} parent=1 // pred_check_branch
      %9 = sbr.rel (0) target = $region5
    $region4: #{tpu_custom_call.1} parent=1 // pred_region
      _
    $region5: #{tpu_custom_call.1} parent=1 // pred_fallthru
      _
    // Predicated region
    $region6: #{tpu_custom_call.1} parent=1 // pred_check
      _
    $region7: #{tpu_custom_call.1} parent=1 // pred_check_branch
      %11 = sbr.rel (0) target = $region9
    $region8: #{tpu_custom_call.1} parent=1 // pred_region
      _
    $region9: #{tpu_custom_call.1} parent=1 // pred_fallthru
      _
    %p12 = scmp.eq.s32.totalorder 0, 0
    // Predicated region
    $region10: #{tpu_custom_call.1} parent=1 // pred_check
      %p13 = pneg %p12
    $region11: #{tpu_custom_call.1} parent=1 // pred_check_branch
      %15 = sbr.rel (%p13) target = $region13
    $region12: #{tpu_custom_call.1} parent=1 // pred_region
      %vm16 = vcmask 7168
      %17 = vst.msk [vmem:[#allocation2] sm:$0xff] %vm16, 0.0
      %18 = vst.msk [vmem:[#allocation2 + $0x8] sm:$0xff] %vm16, 0.0
      %19 = vst.msk [vmem:[#allocation3] sm:$0xff] %vm16, 0.0
      %20 = vst.msk [vmem:[#allocation3 + $0x8] sm:$0xff] %vm16, 0.0
    $region13: #{tpu_custom_call.1} parent=1 // pred_fallthru
      _
    %v21 = vld [vmem:[%s0] sm:$0xff]
    %v22 = vld [vmem:[%s0 + $0x8] sm:$0xff]
    %v23 = vld [vmem:[%s1] sm:$0xff]
    %v24 = vld [vmem:[%s1 + $0x8] sm:$0xff]
    %vm25 = vcmask 80896
    %v26 = vsel %vm25, %v21, -inf
    %27 = vmax.xlane.f32.xlu0 %v26
    %v28 = vpop.xlane.xlu0 %27
    %v29 = vsel %vm25, %v22, -inf
    %30 = vmax.xlane.f32.xlu0 %v29
    %v31 = vpop.xlane.xlu0 %30
    %v32 = vsub.f32 %v21, %v28
    %v33 = vsub.f32 %v22, %v31
    %v34 = vmul.f32 %v32, 1.442695
    %v35 = vpow.pop %v34
    %v36 = vmul.f32 %v33, 1.442695
    %v37 = vpow.pop %v36
    %v38 = vsel %vm25, %v35, 0.0
    %39 = vadd.xlane.f32.xlu0 %v38
    %v40 = vpop.xlane.xlu0 %39
    %v41 = vsel %vm25, %v37, 0.0
    %42 = vadd.xlane.f32.xlu0 %v41
    %v43 = vpop.xlane.xlu0 %42
    %v44 = vlog2.pop %v40
    %v45 = vmul.f32 %v44, 0.6931472
    %v46 = vlog2.pop %v43
    %v47 = vmul.f32 %v46, 0.6931472
    %v48 = vlaneseq
    %v49 = vand.u32 %v48, 127
    %50 = vset.pattern.permute.xlu0 0
    %51 = vperm.xlu0 %50, %v23
    %v52 = vpop.permute.xlu0 %51
    %53 = vset.pattern.permute.xlu0 0
    %54 = vperm.xlu0 %53, %v24
    %v55 = vpop.permute.xlu0 %54
    %vm56 = vcmp.eq.s32.totalorder %v49, %v52
    %vm57 = vcmp.eq.s32.totalorder %v49, %v55
    %v58 = vsel %vm56, 1, 0
    %v59 = vsel %vm57, 1, 0
    %v60 = vcvt.s32.f32 %v58
    %v61 = vcvt.s32.f32 %v59
    %v62 = vmul.f32 %v60, %v32
    %v63 = vmul.f32 %v61, %v33
    %v64 = vsel %vm25, %v62, 0.0
    %65 = vadd.xlane.f32.xlu0 %v64
    %v66 = vpop.xlane.xlu0 %65
    %v67 = vsel %vm25, %v63, 0.0
    %68 = vadd.xlane.f32.xlu0 %v67
    %v69 = vpop.xlane.xlu0 %68
    %vm70 = vcmp.ge.s32.totalorder %v23, 0
    %vm71 = vcmp.ge.s32.totalorder %v24, 0
    %v72 = vsel %vm70, 1, 0
    %v73 = vsel %vm71, 1, 0
    %v74 = vcvt.s32.f32 %v72
    %v75 = vcvt.s32.f32 %v73
    %v76 = vld [vmem:[#allocation2] sm:$0xff]
    %v77 = vld [vmem:[#allocation2 + $0x8] sm:$0xff]
    %v78 = vsub.f32 %v45, %v66
    %v79 = vsub.f32 %v47, %v69
    %v80 = vmul.f32 %v78, %v74
    %v81 = vmul.f32 %v79, %v75
    %v82 = vadd.f32 %v76, %v80
    %v83 = vadd.f32 %v77, %v81
    %vm84 = vcmask 7168
    %85 = vst.msk [vmem:[#allocation2] sm:$0xff] %vm84, %v82
    %86 = vst.msk [vmem:[#allocation2 + $0x8] sm:$0xff] %vm84, %v83
    %v87 = vld [vmem:[#allocation3] sm:$0xff]
    %v88 = vld [vmem:[#allocation3 + $0x8] sm:$0xff]
    %v89 = vadd.f32 %v87, %v74
    %v90 = vadd.f32 %v88, %v75
    %91 = vst.msk [vmem:[#allocation3] sm:$0xff] %vm84, %v89
    %92 = vst.msk [vmem:[#allocation3 + $0x8] sm:$0xff] %vm84, %v90
    // Predicated region
    $region14: #{tpu_custom_call.1} parent=1 // pred_check
      %p93 = pneg %p12
    $region15: #{tpu_custom_call.1} parent=1 // pred_check_branch
      %95 = sbr.rel (%p93) target = $region17
    $region16: #{tpu_custom_call.1} parent=1 // pred_region
      %v96 = vld [vmem:[#allocation2] sm:$0xff]
      %v97 = vld [vmem:[#allocation2 + $0x8] sm:$0xff]
      %v98 = vsel %vm84, %v96, 0.0
      %v99 = vsel %vm84, %v97, 0.0
      %v100 = vadd.f32 %v98, %v99
      %101 = vadd.xlane.f32.xlu0 %v100
      %v102 = vpop.xlane.xlu0 %101
      %v103 = vrot.slane %v102, 4
      %v104 = vadd.f32 %v102, %v103
      %v105 = vrot.slane %v104, 2
      %v106 = vadd.f32 %v104, %v105
      %v107 = vrot.slane %v106, 1
      %v108 = vadd.f32 %v106, %v107
      %s109 = vtos %v108
      %v110 = vld [vmem:[#allocation3] sm:$0xff]
      %v111 = vld [vmem:[#allocation3 + $0x8] sm:$0xff]
      %v112 = vsel %vm84, %v110, 0.0
      %v113 = vsel %vm84, %v111, 0.0
      %v114 = vadd.f32 %v112, %v113
      %115 = vadd.xlane.f32.xlu0 %v114
      %v116 = vpop.xlane.xlu0 %115
      %v117 = vrot.slane %v116, 4
      %v118 = vadd.f32 %v116, %v117
      %v119 = vrot.slane %v118, 2
      %v120 = vadd.f32 %v118, %v119
      %v121 = vrot.slane %v120, 1
      %v122 = vadd.f32 %v120, %v121
      %s123 = vtos %v122
      %v124 = vstv %s123
      %v125 = vrcp.pop %v124
      %s126 = vtos %v125
      %s127 = smul.f32 %s109, %s126
      %s128 = scalar_lea.smem [#allocation4], 0
      %129 = sst [smem:[%s128]] %s127
    $region17: #{tpu_custom_call.1} parent=1 // pred_fallthru
      _
    // Predicated region
    $region18: #{tpu_custom_call.1} parent=1 // pred_check
      _
    $region19: #{tpu_custom_call.1} parent=1 // pred_check_branch
      %131 = sbr.rel (0) target = $region21
    $region20: #{tpu_custom_call.1} parent=1 // pred_region
      %s133 = ssub.s32 16, 16
      %134 = vsyncadd [#allocation5], %s133
      %137 = dma.smem_to_hbm [#allocation4], 16, %s2, [#allocation5]
    $region21: #{tpu_custom_call.1} parent=1 // pred_fallthru
      _
    // Predicated region
    $region22: #{tpu_custom_call.1} parent=1 // pred_check
      _
    $region23: #{tpu_custom_call.1} parent=1 // pred_check_branch
      %139 = sbr.rel (0) target = $region25
    $region24: #{tpu_custom_call.1} parent=1 // pred_region
      %140 = dma.done [#allocation5], 16
    $region25: #{tpu_custom_call.1} parent=1 // pred_fallthru
      _
    %141 = sfence
    %142 = vsyncpa [#allocation5], 1

</llo_original>
